<compile_context>
chip_gen: v7x
topology: tpu7x:2x2x1
jax: 0.10.0
libtpu: 0.0.40
codegen_flags: <defaults>
</compile_context>

<pallas_src>
import functools
import math

import jax
import jax.numpy as jnp
from jax.experimental import pallas as pl
from jax.experimental.pallas import tpu as pltpu

# 32-component hypercomplex multiplication table (verbatim from the module).
kernel_list = [[1, 2, 3, 4, 5, 6, 7, 8, 9, 10, 11, 12, 13, 14, 15, 16, 17, 18, 19, 20, 21, 22, 23, 24, 25, 26, 27, 28, 29, 30, 31, 32], [2, -1, 4, -3, 6, -5, -8, 7, 10, -9, -12, 11, -14, 13, 16, -15, 18, -17, -20, 19, -22, 21, 24, -23, -26, 25, 28, -27, 30, -29, -32, 31], [3, -4, -1, 2, 7, 8, -5, -6, 11, 12, -9, -10, -15, -16, 13, 14, 19, 20, -17, -18, -23, -24, 21, 22, -27, -28, 25, 26, 31, 32, -29, -30], [4, 3, -2, -1, 8, -7, 6, -5, 12, -11, 10, -9, -16, 15, -14, 13, 20, -19, 18, -17, -24, 23, -22, 21, -28, 27, -26, 25, 32, -31, 30, -29], [5, -6, -7, -8, -1, 2, 3, 4, 13, 14, 15, 16, -9, -10, -11, -12, 21, 22, 23, 24, -17, -18, -19, -20, -29, -30, -31, -32, 25, 26, 27, 28], [6, 5, -8, 7, -2, -1, -4, 3, 14, -13, 16, -15, 10, -9, 12, -11, 22, -21, 24, -23, 18, -17, 20, -19, -30, 29, -32, 31, -26, 25, -28, 27], [7, 8, 5, -6, -3, 4, -1, -2, 15, -16, -13, 14, 11, -12, -9, 10, 23, -24, -21, 22, 19, -20, -17, 18, -31, 32, 29, -30, -27, 28, 25, -26], [8, -7, 6, 5, -4, -3, 2, -1, 16, 15, -14, -13, 12, 11, -10, -9, 24, 23, -22, -21, 20, 19, -18, -17, -32, -31, 30, 29, -28, -27, 26, 25], [9, -10, -11, -12, -13, -14, -15, -16, -1, 2, 3, 4, 5, 6, 7, 8, 25, 26, 27, 28, 29, 30, 31, 32, -17, -18, -19, -20, -21, -22, -23, -24], [10, 9, -12, 11, -14, 13, 16, -15, -2, -1, -4, 3, -6, 5, 8, -7, 26, -25, 28, -27, 30, -29, -32, 31, 18, -17, 20, -19, 22, -21, -24, 23], [11, 12, 9, -10, -15, -16, 13, 14, -3, 4, -1, -2, -7, -8, 5, 6, 27, -28, -25, 26, 31, 32, -29, -30, 19, -20, -17, 18, 23, 24, -21, -22], [12, -11, 10, 9, -16, 15, -14, 13, -4, -3, 2, -1, -8, 7, -6, 5, 28, 27, -26, -25, 32, -31, 30, -29, 20, 19, -18, -17, 24, -23, 22, -21], [13, 14, 15, 16, 9, -10, -11, -12, -5, 6, 7, 8, -1, -2, -3, -4, 29, -30, -31, -32, -25, 26, 27, 28, 21, -22, -23, -24, -17, 18, 19, 20], [14, -13, 16, -15, 10, 9, 12, -11, -6, -5, 8, -7, 2, -1, 4, -3, 30, 29, -32, 31, -26, -25, -28, 27, 22, 21, -24, 23, -18, -17, -20, 19], [15, -16, -13, 14, 11, -12, 9, 10, -7, -8, -5, 6, 3, -4, -1, 2, 31, 32, 29, -30, -27, 28, -25, -26, 23, 24, 21, -22, -19, 20, -17, -18], [16, 15, -14, -13, 12, 11, -10, 9, -8, 7, -6, -5, 4, 3, -2, -1, 32, -31, 30, 29, -28, -27, 26, -25, 24, -23, 22, 21, -20, -19, 18, -17], [17, -18, -19, -20, -21, -22, -23, -24, -25, -26, -27, -28, -29, -30, -31, -32, -1, 2, 3, 4, 5, 6, 7, 8, 9, 10, 11, 12, 13, 14, 15, 16], [18, 17, -20, 19, -22, 21, 24, -23, -26, 25, 28, -27, 30, -29, -32, 31, -2, -1, -4, 3, -6, 5, 8, -7, -10, 9, 12, -11, 14, -13, -16, 15], [19, 20, 17, -18, -23, -24, 21, 22, -27, -28, 25, 26, 31, 32, -29, -30, -3, 4, -1, -2, -7, -8, 5, 6, -11, -12, 9, 10, 15, 16, -13, -14], [20, -19, 18, 17, -24, 23, -22, 21, -28, 27, -26, 25, 32, -31, 30, -29, -4, -3, 2, -1, -8, 7, -6, 5, -12, 11, -10, 9, 16, -15, 14, -13], [21, 22, 23, 24, 17, -18, -19, -20, -29, -30, -31, -32, 25, 26, 27, 28, -5, 6, 7, 8, -1, -2, -3, -4, -13, -14, -15, -16, 9, 10, 11, 12], [22, -21, 24, -23, 18, 17, 20, -19, -30, 29, -32, 31, -26, 25, -28, 27, -6, -5, 8, -7, 2, -1, 4, -3, -14, 13, -16, 15, -10, 9, -12, 11], [23, -24, -21, 22, 19, -20, 17, 18, -31, 32, 29, -30, -27, 28, 25, -26, -7, -8, -5, 6, 3, -4, -1, 2, -15, 16, 13, -14, -11, 12, 9, -10], [24, 23, -22, -21, 20, 19, -18, 17, -32, -31, 30, 29, -28, -27, 26, 25, -8, 7, -6, -5, 4, 3, -2, -1, -16, -15, 14, 13, -12, -11, 10, 9], [25, 26, 27, 28, 29, 30, 31, 32, 17, -18, -19, -20, -21, -22, -23, -24, -9, 10, 11, 12, 13, 14, 15, 16, -1, -2, -3, -4, -5, -6, -7, -8], [26, -25, 28, -27, 30, -29, -32, 31, 18, 17, 20, -19, 22, -21, -24, 23, -10, -9, 12, -11, 14, -13, -16, 15, 2, -1, 4, -3, 6, -5, -8, 7], [27, -28, -25, 26, 31, 32, -29, -30, 19, -20, 17, 18, 23, 24, -21, -22, -11, -12, -9, 10, 15, 16, -13, -14, 3, -4, -1, 2, 7, 8, -5, -6], [28, 27, -26, -25, 32, -31, 30, -29, 20, 19, -18, 17, 24, -23, 22, -21, -12, 11, -10, -9, 16, -15, 14, -13, 4, 3, -2, -1, 8, -7, 6, -5], [29, -30, -31, -32, -25, 26, 27, 28, 21, -22, -23, -24, 17, 18, 19, 20, -13, -14, -15, -16, -9, 10, 11, 12, 5, -6, -7, -8, -1, 2, 3, 4], [30, 29, -32, 31, -26, -25, -28, 27, 22, 21, -24, 23, -18, 17, -20, 19, -14, 13, -16, 15, -10, -9, -12, 11, 6, 5, -8, 7, -2, -1, -4, 3], [31, 32, 29, -30, -27, 28, -25, -26, 23, 24, 21, -22, -19, 20, 17, -18, -15, 16, 13, -14, -11, 12, -9, -10, 7, 8, 5, -6, -3, 4, -1, -2], [32, -31, 30, 29, -28, -27, 26, -25, 24, -23, 22, 21, -20, -19, 18, 17, -16, -15, 14, 13, -12, -11, 10, -9, 8, -7, 6, 5, -4, -3, 2, -1]]


# ---------------------------------------------------------------------------
# hamilton construction (parameter setup — hoisted out of the forward path)
# ---------------------------------------------------------------------------
def make_quaternion_mul(weight):
    """Fast hamilton build: one gather + sign broadcast (no 1024 concats).

    weight: (in_features // 4, out_features) -> (32 * (in_features // 4), out_features)
    """
    idx = jnp.asarray(
        [[abs(kernel_list[j][i]) - 1 for i in range(32)] for j in range(32)],
        dtype=jnp.int32)
    sgn = jnp.asarray(
        [[1.0 if kernel_list[j][i] > 0 else -1.0 for i in range(32)] for j in range(32)],
        dtype=weight.dtype)
    rows, out = weight.shape
    dim = out // 32
    w3 = weight.reshape(rows, 32, dim)
    g = jnp.take(w3, idx, axis=1)                      # (rows, j, i, dim)
    g = g * sgn[None, :, :, None]
    return jnp.transpose(g, (1, 0, 2, 3)).reshape(32 * rows, 32 * dim)


def make_quaternion_mul_ref(weight):
    """Slow reference port of the original slice+concat construction (for checking)."""
    rows, out = weight.shape
    dim = out // 32
    dim_list = [weight[:, k * dim:(k + 1) * dim] for k in range(32)]
    cat_cols = []
    for i in range(32):
        tempt = []
        for j in range(32):
            v = kernel_list[j][i]
            tempt.append(dim_list[v - 1] if v > 0 else -dim_list[-v - 1])
        cat_cols.append(jnp.concatenate(tempt, axis=0))
    return jnp.concatenate(cat_cols, axis=1)


# ---------------------------------------------------------------------------
# Padding / tile helpers
# ---------------------------------------------------------------------------
def _round_up(n, m):
    return ((n + m - 1) // m) * m


def _pad2(a, rows, cols):
    pr, pc = rows - a.shape[0], cols - a.shape[1]
    if pr == 0 and pc == 0:
        return a
    return jnp.pad(a, ((0, pr), (0, pc)))


def _pick_lane_tile(dim_pad):
    """dim_pad is a multiple of 128; pick the largest tile in {512,256,128} dividing it."""
    for t in (512, 256, 128):
        if dim_pad % t == 0:
            return t
    return dim_pad


def prepare_hamilton(weight):
    """Build hamilton once per weight: gather, zero-pad lane dims to 128, cast bf16."""
    ham = make_quaternion_mul(weight)
    k, f = ham.shape
    k_pad = _round_up(k, 128)
    f_pad = _round_up(f, 128)
    return _pad2(ham, k_pad, f_pad).astype(jnp.bfloat16), f


# ---------------------------------------------------------------------------
# Fused kernel: out = relu(adj @ (x @ hamilton))
#   grid = (i: output row tiles [parallel],
#           kn: node-reduction tiles [arbitrary],
#           kk: K-reduction tiles [arbitrary, innermost])
# ---------------------------------------------------------------------------
def _gate_fused_kernel(adj_ref, x_ref, h_ref, o_ref, acc_ref, sup_ref):
    kn = pl.program_id(1)
    kk = pl.program_id(2)
    last_kn = pl.num_programs(1) - 1
    last_kk = pl.num_programs(2) - 1

    @pl.when(jnp.logical_and(kn == 0, kk == 0))
    def _():
        acc_ref[...] = jnp.zeros_like(acc_ref)

    @pl.when(kk == 0)
    def _():
        sup_ref[...] = jnp.zeros_like(sup_ref)

    # Partial support for node-column tile kn (f32 VMEM accumulator, never hits HBM).
    sup_ref[...] += jnp.dot(x_ref[...].astype(jnp.bfloat16), h_ref[...],
                            preferred_element_type=jnp.float32)

    @pl.when(kk == last_kk)
    def _():
        # Aggregate this node tile into the output row tile; adj is cast to bf16
        # in-kernel (no wrapper-side cast pass over the N x N array in HBM).
        acc_ref[...] += jnp.dot(adj_ref[...].astype(jnp.bfloat16),
                                sup_ref[...].astype(jnp.bfloat16),
                                preferred_element_type=jnp.float32)

    @pl.when(jnp.logical_and(kk == last_kk, kn == last_kn))
    def _():
        o_ref[...] = jnp.maximum(acc_ref[...], 0.0).astype(o_ref.dtype)


@functools.partial(jax.jit, static_argnums=(3,))
def gate_forward(x, adj, hamilton_padded, f_out):
    """relu(adj @ (x @ hamilton)); x:(N,K) f32, adj:(N,N) f32, hamilton_padded bf16."""
    n, k = x.shape
    k_pad, f_pad = hamilton_padded.shape
    assert adj.shape == (n, n)
    assert k_pad == _round_up(k, 128)

    # Lane (node-reduction) dim of adj == row dim of x: must be a multiple of 128.
    n_col_pad = _round_up(n, 128)
    tkn = _pick_lane_tile(n_col_pad)

    # Row (sublane) dims only need a multiple of 8 / the row tile — no blanket 128 pad.
    if n <= 512:
        tm = _round_up(n, 8)
        n_row_pad = tm                      # single row tile (padding waste < tile)
    elif n <= 4096:
        tm = 256                            # >= 2 row tiles -> shards across v7x's 2 TCs
        n_row_pad = _round_up(n, 256)
    else:
        tm = 512                            # bigger streamed tiles for the HBM-bound case
        n_row_pad = _round_up(n, 512)

    tkk = _pick_lane_tile(k_pad)

    # Conservative per-step VMEM estimate (f32 inputs double-buffered + scratch);
    # shrink reduction tiles if out_features ever makes this large.
    def est(tkn_, tkk_):
        return (2 * tm * tkn_ * 4 + 2 * tkn_ * tkk_ * 4 + 2 * tkk_ * f_pad * 2 +
                2 * tm * f_pad * 4 + tm * f_pad * 4 + tkn_ * f_pad * 4)

    budget = 24 * 1024 * 1024
    while est(tkn, tkk) > budget and (tkn > 128 or tkk > 128):
        if tkk > 128:
            tkk //= 2
        else:
            tkn //= 2

    # Zero padding is exact for matmul + ReLU; pads are skipped when shapes conform.
    adj_p = _pad2(adj, n_row_pad, n_col_pad)     # f32, cast to bf16 inside the kernel
    x_p = _pad2(x, n_col_pad, k_pad)             # f32, cast to bf16 inside the kernel

    grid = (n_row_pad // tm, n_col_pad // tkn, k_pad // tkk)

    out_p = pl.pallas_call(
        _gate_fused_kernel,
        out_shape=jax.ShapeDtypeStruct((n_row_pad, f_pad), jnp.float32),
        grid_spec=pltpu.PrefetchScalarGridSpec(
            num_scalar_prefetch=0,
            grid=grid,
            in_specs=[
                pl.BlockSpec((tm, tkn), lambda i, kn, kk: (i, kn)),     # adj row panel
                pl.BlockSpec((tkn, tkk), lambda i, kn, kk: (kn, kk)),   # x node tile
                pl.BlockSpec((tkk, f_pad), lambda i, kn, kk: (kk, 0)),  # hamilton slab
            ],
            out_specs=pl.BlockSpec((tm, f_pad), lambda i, kn, kk: (i, 0)),
            scratch_shapes=[
                pltpu.VMEM((tm, f_pad), jnp.float32),    # output accumulator
                pltpu.VMEM((tkn, f_pad), jnp.float32),   # support tile (VMEM-resident)
            ],
        ),
        compiler_params=pltpu.CompilerParams(
            dimension_semantics=("parallel", "arbitrary", "arbitrary"),
            # <= 48 MiB: within v7x's 64 MiB physical VMEM; plenty on v5e/v6e (128 MiB).
            vmem_limit_bytes=int(min(48 * 1024 * 1024,
                                     max(32 * 1024 * 1024, 2 * est(tkn, tkk)))),
        ),
    )(adj_p, x_p, hamilton_padded)

    return out_p[:n, :f_out]


def gate_apply(x, adj, weight):
    """Full GATE.forward (eval: dropout=identity, quaternion_ff=True, act=relu).

    For repeated inference, call prepare_hamilton(weight) once and reuse its result.
    """
    hamilton_padded, f_out = prepare_hamilton(weight)
    return gate_forward(x, adj, hamilton_padded, f_out)


if __name__ == "__main__":
    # Module hyperparameters (small, consistent with the forward's shape algebra):
    #   weight: (in_features // 4, out_features); hamilton: (32*(in_features//4), out_features)
    #   => input feature dim must be 32 * (in_features // 4).
    in_features = 16
    out_features = 32            # must be divisible by 32 for the 32-way split
    N = 8                        # number of graph nodes
    K = 32 * (in_features // 4)  # = 128, input feature dimension

    key = jax.random.PRNGKey(0)
    k_w, k_x, k_a = jax.random.split(key, 3)

    # Deterministic parameter init, same law as reset_parameters():
    stdv = math.sqrt(6.0 / ((in_features // 4) + out_features))
    weight = jax.random.uniform(
        k_w, (in_features // 4, out_features), jnp.float32, minval=-stdv, maxval=stdv)

    x = jax.random.normal(k_x, (N, K), jnp.float32)
    # Dense (row-normalized) adjacency standing in for the sparse `adj` of torch.spmm.
    adj_raw = jax.random.uniform(k_a, (N, N), jnp.float32)
    adj = adj_raw / jnp.sum(adj_raw, axis=1, keepdims=True)

    # hamilton build/cast/pad hoisted out of the forward (done once per weight).
    hamilton_padded, f_out = prepare_hamilton(weight)
    out = gate_forward(x, adj, hamilton_padded, f_out)
    out = jax.block_until_ready(out)
    assert out.shape == (N, out_features)

    # --- correctness checks ---
    # 1) fast hamilton == original slice/concat construction
    ham_fast = make_quaternion_mul(weight)
    ham_ref = make_quaternion_mul_ref(weight)
    assert jnp.allclose(ham_fast, ham_ref, atol=0.0, rtol=0.0)

    # 2) kernel output vs reference with matching in-kernel bf16 numerics (f32 accum)
    xb = x.astype(jnp.bfloat16).astype(jnp.float32)
    hb = ham_ref.astype(jnp.bfloat16).astype(jnp.float32)
    ab = adj.astype(jnp.bfloat16).astype(jnp.float32)
    support_ref = (xb @ hb).astype(jnp.bfloat16).astype(jnp.float32)
    ref = jnp.maximum(ab @ support_ref, 0.0)
    assert jnp.allclose(out, ref, atol=2e-2, rtol=2e-2)

    # 3) loose sanity vs pure-f32 reference (bf16 inputs shift numerics slightly)
    ref_f32 = jnp.maximum(adj @ (x @ ham_ref), 0.0)
    assert jnp.allclose(out, ref_f32, atol=1e-1, rtol=1e-1)

    print("KERNEL_OK")
</pallas_src>

<mosaic_0001>
module attributes {stable_mosaic.version = 11 : i64} {
  func.func @_gate_fused_kernel(%arg0: i32, %arg1: i32, %arg2: i32, %arg3: memref<8x128xf32, #tpu.memory_space<vmem>>, %arg4: memref<128x128xf32, #tpu.memory_space<vmem>>, %arg5: memref<128x128xbf16, #tpu.memory_space<vmem>>, %arg6: memref<8x128xf32, #tpu.memory_space<vmem>>, %arg7: memref<8x128xf32, #tpu.memory_space<vmem>>, %arg8: memref<128x128xf32, #tpu.memory_space<vmem>>) attributes {dimension_semantics = [#tpu.dimension_semantics<parallel>, #tpu.dimension_semantics<arbitrary>, #tpu.dimension_semantics<arbitrary>], iteration_bounds = array<i64: 1, 1, 1>, scalar_prefetch = 0 : i64, scratch_operands = 2 : i64, tpu.core_type = #tpu.core_type<tc>, window_params = [{transform_indices = @transform_0, window_bounds = array<i64: 8, 128>}, {transform_indices = @transform_1, window_bounds = array<i64: 128, 128>}, {transform_indices = @transform_2, window_bounds = array<i64: 128, 128>}, {transform_indices = @transform_3, window_bounds = array<i64: 8, 128>}]} {
    %c0_i32 = arith.constant 0 : i32
    %0 = arith.cmpi eq, %arg1, %c0_i32 : i32
    %c0_i32_0 = arith.constant 0 : i32
    %1 = arith.cmpi eq, %arg2, %c0_i32_0 : i32
    %2 = arith.andi %0, %1 : i1
    %3 = arith.extui %2 : i1 to i32
    %c0_i32_1 = arith.constant 0 : i32
    %4 = arith.cmpi ne, %3, %c0_i32_1 : i32
    scf.if %4 {
      %cst_16 = arith.constant 0.000000e+00 : f32
      %23 = vector.broadcast %cst_16 : f32 to vector<8x128xf32>
      %c0_17 = arith.constant 0 : index
      %c0_18 = arith.constant 0 : index
      %24 = vector.load %arg7[%c0_17, %c0_18] : memref<8x128xf32, #tpu.memory_space<vmem>>, vector<8x128xf32>
      tpu.vector_store %arg7[%c0_17, %c0_18], %23 {strides = array<i32>} : memref<8x128xf32, #tpu.memory_space<vmem>>, vector<8x128xf32>,
    } else {
    }
    %c0_i32_2 = arith.constant 0 : i32
    %5 = arith.cmpi eq, %arg2, %c0_i32_2 : i32
    %6 = arith.extui %5 : i1 to i32
    %c0_i32_3 = arith.constant 0 : i32
    %7 = arith.cmpi ne, %6, %c0_i32_3 : i32
    scf.if %7 {
      %cst_16 = arith.constant 0.000000e+00 : f32
      %23 = vector.broadcast %cst_16 : f32 to vector<128x128xf32>
      %c0_17 = arith.constant 0 : index
      %c0_18 = arith.constant 0 : index
      %24 = vector.load %arg8[%c0_17, %c0_18] : memref<128x128xf32, #tpu.memory_space<vmem>>, vector<128x128xf32>
      tpu.vector_store %arg8[%c0_17, %c0_18], %23 {strides = array<i32>} : memref<128x128xf32, #tpu.memory_space<vmem>>, vector<128x128xf32>,
    } else {
    }
    %c0 = arith.constant 0 : index
    %c0_4 = arith.constant 0 : index
    %8 = vector.load %arg8[%c0, %c0_4] : memref<128x128xf32, #tpu.memory_space<vmem>>, vector<128x128xf32>
    %c0_5 = arith.constant 0 : index
    %c0_6 = arith.constant 0 : index
    %9 = vector.load %arg4[%c0_5, %c0_6] : memref<128x128xf32, #tpu.memory_space<vmem>>, vector<128x128xf32>
    %10 = arith.truncf %9 : vector<128x128xf32> to vector<128x128xbf16>
    %c0_7 = arith.constant 0 : index
    %c0_8 = arith.constant 0 : index
    %11 = vector.load %arg5[%c0_7, %c0_8] : memref<128x128xbf16, #tpu.memory_space<vmem>>, vector<128x128xbf16>
    %cst = arith.constant dense<0.000000e+00> : vector<128x128xf32>
    %12 = tpu.matmul %10, %11, %cst {dimension_numbers = #tpu.dot_dimension_numbers<[1], [0], [0], [1], [0, 0, 1, 1], [], []>} : vector<128x128xbf16>, vector<128x128xbf16>, vector<128x128xf32> -> vector<128x128xf32>
    %13 = arith.addf %8, %12 : vector<128x128xf32>
    %c0_9 = arith.constant 0 : index
    %c0_10 = arith.constant 0 : index
    %14 = vector.load %arg8[%c0_9, %c0_10] : memref<128x128xf32, #tpu.memory_space<vmem>>, vector<128x128xf32>
    tpu.vector_store %arg8[%c0_9, %c0_10], %13 {strides = array<i32>} : memref<128x128xf32, #tpu.memory_space<vmem>>, vector<128x128xf32>,
    %c0_i32_11 = arith.constant 0 : i32
    %15 = arith.cmpi eq, %arg2, %c0_i32_11 : i32
    %16 = arith.extui %15 : i1 to i32
    %c0_i32_12 = arith.constant 0 : i32
    %17 = arith.cmpi ne, %16, %c0_i32_12 : i32
    scf.if %17 {
      %c0_16 = arith.constant 0 : index
      %c0_17 = arith.constant 0 : index
      %23 = vector.load %arg7[%c0_16, %c0_17] : memref<8x128xf32, #tpu.memory_space<vmem>>, vector<8x128xf32>
      %c0_18 = arith.constant 0 : index
      %c0_19 = arith.constant 0 : index
      %24 = vector.load %arg3[%c0_18, %c0_19] : memref<8x128xf32, #tpu.memory_space<vmem>>, vector<8x128xf32>
      %25 = arith.truncf %24 : vector<8x128xf32> to vector<8x128xbf16>
      %c0_20 = arith.constant 0 : index
      %c0_21 = arith.constant 0 : index
      %26 = vector.load %arg8[%c0_20, %c0_21] : memref<128x128xf32, #tpu.memory_space<vmem>>, vector<128x128xf32>
      %27 = arith.truncf %26 : vector<128x128xf32> to vector<128x128xbf16>
      %cst_22 = arith.constant dense<0.000000e+00> : vector<8x128xf32>
      %28 = tpu.matmul %25, %27, %cst_22 {dimension_numbers = #tpu.dot_dimension_numbers<[1], [0], [0], [1], [0, 0, 1, 1], [], []>} : vector<8x128xbf16>, vector<128x128xbf16>, vector<8x128xf32> -> vector<8x128xf32>
      %29 = arith.addf %23, %28 : vector<8x128xf32>
      %c0_23 = arith.constant 0 : index
      %c0_24 = arith.constant 0 : index
      %30 = vector.load %arg7[%c0_23, %c0_24] : memref<8x128xf32, #tpu.memory_space<vmem>>, vector<8x128xf32>
      tpu.vector_store %arg7[%c0_23, %c0_24], %29 {strides = array<i32>} : memref<8x128xf32, #tpu.memory_space<vmem>>, vector<8x128xf32>,
    } else {
    }
    %c0_i32_13 = arith.constant 0 : i32
    %18 = arith.cmpi eq, %arg2, %c0_i32_13 : i32
    %c0_i32_14 = arith.constant 0 : i32
    %19 = arith.cmpi eq, %arg1, %c0_i32_14 : i32
    %20 = arith.andi %18, %19 : i1
    %21 = arith.extui %20 : i1 to i32
    %c0_i32_15 = arith.constant 0 : i32
    %22 = arith.cmpi ne, %21, %c0_i32_15 : i32
    scf.if %22 {
      %c0_16 = arith.constant 0 : index
      %c0_17 = arith.constant 0 : index
      %23 = vector.load %arg7[%c0_16, %c0_17] : memref<8x128xf32, #tpu.memory_space<vmem>>, vector<8x128xf32>
      %cst_18 = arith.constant 0.000000e+00 : f32
      %24 = vector.broadcast %cst_18 : f32 to vector<8x128xf32>
      %25 = arith.maximumf %23, %24 : vector<8x128xf32>
      %c0_19 = arith.constant 0 : index
      %c0_20 = arith.constant 0 : index
      %26 = vector.load %arg6[%c0_19, %c0_20] : memref<8x128xf32, #tpu.memory_space<vmem>>, vector<8x128xf32>
      tpu.vector_store %arg6[%c0_19, %c0_20], %25 {strides = array<i32>} : memref<8x128xf32, #tpu.memory_space<vmem>>, vector<8x128xf32>,
    } else {
    }
    return
  }
  func.func @transform_0(%arg0: i32, %arg1: i32, %arg2: i32) -> (i32, i32) {
    %c0_i32 = arith.constant 0 : i32
    return %arg0, %arg1 : i32, i32
  }
  func.func @transform_1(%arg0: i32, %arg1: i32, %arg2: i32) -> (i32, i32) {
    %c0_i32 = arith.constant 0 : i32
    return %arg1, %arg2 : i32, i32
  }
  func.func @transform_2(%arg0: i32, %arg1: i32, %arg2: i32) -> (i32, i32) {
    %c0_i32 = arith.constant 0 : i32
    %c0_i32_0 = arith.constant 0 : i32
    return %arg2, %c0_i32 : i32, i32
  }
  func.func @transform_3(%arg0: i32, %arg1: i32, %arg2: i32) -> (i32, i32) {
    %c0_i32 = arith.constant 0 : i32
    %c0_i32_0 = arith.constant 0 : i32
    return %arg0, %c0_i32 : i32, i32
  }
}

</mosaic_0001>

<llo_original>
// kernel: gate_forward.1
$region0: #{gate_forward.1}
  #allocation0 [shape = 'u32[]', space=smem, size = 0x4, offset = 0x4, fixed_abs, tag = 'smem constant byte address 0x4 - core index']
  #allocation1 [shape = 'u32[144,128]{1,0:T(1,128)}', space=vmem, size = 0x12000, scoped, tag = 'internal scratch']
  #allocation2 [shape = 'f32[8,128]{1,0:T(8,128)}', space=vmem, size = 0x1000, scoped, tag = 'scratch operand']
  #allocation3 [shape = 'f32[128,128]{1,0:T(8,128)}', space=vmem, size = 0x10000, scoped, tag = 'scratch operand']
  %s0 = inlined_call_operand.vmem [shape: f32[8,128], index: 0, kind: input, shape index: {}]
  %s1 = inlined_call_operand.vmem [shape: f32[128,128], index: 1, kind: input, shape index: {}]
  %s2 = inlined_call_operand.vmem [shape: bf16[128,128], index: 2, kind: input, shape index: {}]
  %s3 = inlined_call_operand.hbm [shape: f32[8,128], index: 3, kind: output, shape index: {}]
  %s4 = sld [smem:[#allocation0]]
  $region38: #{gate_forward.1} parent=0
    _
  %s6 = ssub.s32 1, %s4
  %s7 = scalar_select 0, %s6, %s4
  $region1: #{gate_forward.1} parent=0
    #allocation4 [shape = 'u8[4096]{0}', space=vmem, size = 0x1000, scoped, tag = 'output window, operand 0, single buffered']
    #allocation5 [shape = 's32[1]{0}', space=sflag, size = 0x4, scoped, tag = 'scoped memory for gate_forward.1']
    %8 = vsyncpa [#allocation5], 0
    // Predicated region
    $region2: #{gate_forward.1} parent=1 // pred_check
      _
    $region3: #{gate_forward.1} parent=1 // pred_check_branch
      %10 = sbr.rel (0) target = $region5
    $region4: #{gate_forward.1} parent=1 // pred_region
      _
    $region5: #{gate_forward.1} parent=1 // pred_fallthru
      _
    // Predicated region
    $region6: #{gate_forward.1} parent=1 // pred_check
      _
    $region7: #{gate_forward.1} parent=1 // pred_check_branch
      %12 = sbr.rel (0) target = $region9
    $region8: #{gate_forward.1} parent=1 // pred_region
      _
    $region9: #{gate_forward.1} parent=1 // pred_fallthru
      _
    // Predicated region
    $region10: #{gate_forward.1} parent=1 // pred_check
      _
    $region11: #{gate_forward.1} parent=1 // pred_check_branch
      %14 = sbr.rel (0) target = $region13
    $region12: #{gate_forward.1} parent=1 // pred_region
      _
    $region13: #{gate_forward.1} parent=1 // pred_fallthru
      _
    %p16 = scmp.eq.s32.totalorder 0, 0
    %p17 = scmp.eq.s32.totalorder 0, 0
    %p18 = pnand %p16, %p17
    %p19 = pneg %p18
    // Predicated region
    $region14: #{gate_forward.1} parent=1 // pred_check
      _
    $region15: #{gate_forward.1} parent=1 // pred_check_branch
      %21 = sbr.rel (%p18) target = $region17
    $region16: #{gate_forward.1} parent=1 // pred_region
      %22 = vst [vmem:[#allocation2] sm:$0xff] 0.0
    $region17: #{gate_forward.1} parent=1 // pred_fallthru
      _
    // Predicated region
    $region18: #{gate_forward.1} parent=1 // pred_check
      %p23 = pneg %p17
    $region19: #{gate_forward.1} parent=1 // pred_check_branch
      %25 = sbr.rel (%p23) target = $region21
    $region20: #{gate_forward.1} parent=1 // pred_region
      %26 = vst [vmem:[#allocation3] sm:$0xff] 0.0
      %27 = vst [vmem:[#allocation3 + $0x8] sm:$0xff] 0.0
      %28 = vst [vmem:[#allocation3 + $0x10] sm:$0xff] 0.0
      %29 = vst [vmem:[#allocation3 + $0x18] sm:$0xff] 0.0
      %30 = vst [vmem:[#allocation3 + $0x20] sm:$0xff] 0.0
      %31 = vst [vmem:[#allocation3 + $0x28] sm:$0xff] 0.0
      %32 = vst [vmem:[#allocation3 + $0x30] sm:$0xff] 0.0
      %33 = vst [vmem:[#allocation3 + $0x38] sm:$0xff] 0.0
      %34 = vst [vmem:[#allocation3 + $0x40] sm:$0xff] 0.0
      %35 = vst [vmem:[#allocation3 + $0x48] sm:$0xff] 0.0
      %36 = vst [vmem:[#allocation3 + $0x50] sm:$0xff] 0.0
      %37 = vst [vmem:[#allocation3 + $0x58] sm:$0xff] 0.0
      %38 = vst [vmem:[#allocation3 + $0x60] sm:$0xff] 0.0
      %39 = vst [vmem:[#allocation3 + $0x68] sm:$0xff] 0.0
      %40 = vst [vmem:[#allocation3 + $0x70] sm:$0xff] 0.0
      %41 = vst [vmem:[#allocation3 + $0x78] sm:$0xff] 0.0
    $region21: #{gate_forward.1} parent=1 // pred_fallthru
      _
    %v42 = vld [vmem:[#allocation3] sm:$0xff]
    %v43 = vld [vmem:[#allocation3 + $0x8] sm:$0xff]
    %v44 = vld [vmem:[#allocation3 + $0x10] sm:$0xff]
    %v45 = vld [vmem:[#allocation3 + $0x18] sm:$0xff]
    %v46 = vld [vmem:[#allocation3 + $0x20] sm:$0xff]
    %v47 = vld [vmem:[#allocation3 + $0x28] sm:$0xff]
    %v48 = vld [vmem:[#allocation3 + $0x30] sm:$0xff]
    %v49 = vld [vmem:[#allocation3 + $0x38] sm:$0xff]
    %v50 = vld [vmem:[#allocation3 + $0x40] sm:$0xff]
    %v51 = vld [vmem:[#allocation3 + $0x48] sm:$0xff]
    %v52 = vld [vmem:[#allocation3 + $0x50] sm:$0xff]
    %v53 = vld [vmem:[#allocation3 + $0x58] sm:$0xff]
    %v54 = vld [vmem:[#allocation3 + $0x60] sm:$0xff]
    %v55 = vld [vmem:[#allocation3 + $0x68] sm:$0xff]
    %v56 = vld [vmem:[#allocation3 + $0x70] sm:$0xff]
    %v57 = vld [vmem:[#allocation3 + $0x78] sm:$0xff]
    %v58 = vld [vmem:[%s1] sm:$0xff]
    %v59 = vld [vmem:[%s1 + $0x8] sm:$0xff]
    %v60 = vld [vmem:[%s1 + $0x10] sm:$0xff]
    %v61 = vld [vmem:[%s1 + $0x18] sm:$0xff]
    %v62 = vld [vmem:[%s1 + $0x20] sm:$0xff]
    %v63 = vld [vmem:[%s1 + $0x28] sm:$0xff]
    %v64 = vld [vmem:[%s1 + $0x30] sm:$0xff]
    %v65 = vld [vmem:[%s1 + $0x38] sm:$0xff]
    %v66 = vld [vmem:[%s1 + $0x40] sm:$0xff]
    %v67 = vld [vmem:[%s1 + $0x48] sm:$0xff]
    %v68 = vld [vmem:[%s1 + $0x50] sm:$0xff]
    %v69 = vld [vmem:[%s1 + $0x58] sm:$0xff]
    %v70 = vld [vmem:[%s1 + $0x60] sm:$0xff]
    %v71 = vld [vmem:[%s1 + $0x68] sm:$0xff]
    %v72 = vld [vmem:[%s1 + $0x70] sm:$0xff]
    %v73 = vld [vmem:[%s1 + $0x78] sm:$0xff]
    %v74 = vpack.c.bf16 %v59, %v58
    %v75 = vpack.c.bf16 %v61, %v60
    %v76 = vpack.c.bf16 %v63, %v62
    %v77 = vpack.c.bf16 %v65, %v64
    %v78 = vpack.c.bf16 %v67, %v66
    %v79 = vpack.c.bf16 %v69, %v68
    %v80 = vpack.c.bf16 %v71, %v70
    %v81 = vpack.c.bf16 %v73, %v72
    %v82 = vld [vmem:[%s2] sm:$0xf]
    %v83 = vld [vmem:[%s2 + $0x4] sm:$0xf]
    %v84 = vld [vmem:[%s2 + $0x8] sm:$0xf]
    %v85 = vld [vmem:[%s2 + $0xc] sm:$0xf]
    %v86 = vld [vmem:[%s2 + $0x10] sm:$0xf]
    %v87 = vld [vmem:[%s2 + $0x14] sm:$0xf]
    %v88 = vld [vmem:[%s2 + $0x18] sm:$0xf]
    %v89 = vld [vmem:[%s2 + $0x1c] sm:$0xf]
    %v90 = vld [vmem:[%s2 + $0x20] sm:$0xf]
    %v91 = vld [vmem:[%s2 + $0x24] sm:$0xf]
    %v92 = vld [vmem:[%s2 + $0x28] sm:$0xf]
    %v93 = vld [vmem:[%s2 + $0x2c] sm:$0xf]
    %v94 = vld [vmem:[%s2 + $0x30] sm:$0xf]
    %v95 = vld [vmem:[%s2 + $0x34] sm:$0xf]
    %v96 = vld [vmem:[%s2 + $0x38] sm:$0xf]
    %v97 = vld [vmem:[%s2 + $0x3c] sm:$0xf]
    %v114 = vunpack.c.l.b16 %v82
    %v115 = vunpack.c.l.b16 %v83
    %v116 = vunpack.c.l.b16 %v84
    %v117 = vunpack.c.l.b16 %v85
    %v118 = vunpack.c.l.b16 %v86
    %v119 = vunpack.c.l.b16 %v87
    %v120 = vunpack.c.l.b16 %v88
    %v121 = vunpack.c.l.b16 %v89
    %v122 = vunpack.c.l.b16 %v90
    %v123 = vunpack.c.l.b16 %v91
    %v124 = vunpack.c.l.b16 %v92
    %v125 = vunpack.c.l.b16 %v93
    %v126 = vunpack.c.l.b16 %v94
    %v127 = vunpack.c.l.b16 %v95
    %v128 = vunpack.c.l.b16 %v96
    %v129 = vunpack.c.l.b16 %v97
    %v130 = vpack.c.b16 %v115, %v114
    %v131 = vpack.c.b16 %v117, %v116
    %v132 = vpack.c.b16 %v119, %v118
    %v133 = vpack.c.b16 %v121, %v120
    %v134 = vpack.c.b16 %v123, %v122
    %v135 = vpack.c.b16 %v125, %v124
    %v136 = vpack.c.b16 %v127, %v126
    %v137 = vpack.c.b16 %v129, %v128
    %146 = vmatprep.subr.bf16.mxu0 0
    %147 = vmatpush1.bf16.msra.mxu0 %v130
    %148 = vmatprep.subr.bf16.mxu0 0
    %149 = vmatpush1.bf16.msra.mxu0 %v131
    %150 = vmatprep.subr.bf16.mxu0 0
    %151 = vmatpush1.bf16.msra.mxu0 %v132
    %152 = vmatprep.subr.bf16.mxu0 0
    %153 = vmatpush1.bf16.msra.mxu0 %v133
    %154 = vmatprep.subr.bf16.mxu0 0
    %155 = vmatpush1.bf16.msra.mxu0 %v134
    %156 = vmatprep.subr.bf16.mxu0 0
    %157 = vmatpush1.bf16.msra.mxu0 %v135
    %158 = vmatprep.subr.bf16.mxu0 0
    %159 = vmatpush1.bf16.msra.mxu0 %v136
    %160 = vmatprep.subr.bf16.mxu0 0
    %161 = vmatpush1.bf16.msra.mxu0 %v137
    %162 = vmatprep.subr.bf16.mxu0 0
    %163 = vmatpush1.bf16.msra.mxu0 0
    %164 = vmatprep.subr.bf16.mxu0 0
    %165 = vmatpush1.bf16.msra.mxu0 0
    %166 = vmatprep.subr.bf16.mxu0 0
    %167 = vmatpush1.bf16.msra.mxu0 0
    %168 = vmatprep.subr.bf16.mxu0 0
    %169 = vmatpush1.bf16.msra.mxu0 0
    %170 = vmatprep.subr.bf16.mxu0 0
    %171 = vmatpush1.bf16.msra.mxu0 0
    %172 = vmatprep.subr.bf16.mxu0 0
    %173 = vmatpush1.bf16.msra.mxu0 0
    %174 = vmatprep.subr.bf16.mxu0 0
    %175 = vmatpush1.bf16.msra.mxu0 0
    %176 = vmatprep.subr.bf16.mxu0 0
    %177 = vmatpush1.bf16.msra.mxu0 0
    %178 = vmatprep.mubr.bf16.mxu0 0
    %179 = vmatmul.mubr.bf16.gmra.mrb[0].mxu0 %v74
    %v180 = vpop.f32.mrb[0].mxu0
    %v181 = vadd.f32 0.0, %v180
    %v182 = vpop.f32.mrb[0].mxu0
    %v183 = vpop.f32.mrb[0].mxu0
    %v184 = vadd.f32 0.0, %v183
    %v185 = vpop.f32.mrb[0].mxu0
    %186 = vmatprep.mubr.bf16.mxu0 0
    %187 = vmatmul.mubr.bf16.gmra.mrb[0].mxu0 %v75
    %v188 = vpop.f32.mrb[0].mxu0
    %v189 = vadd.f32 0.0, %v188
    %v190 = vpop.f32.mrb[0].mxu0
    %v191 = vpop.f32.mrb[0].mxu0
    %v192 = vadd.f32 0.0, %v191
    %v193 = vpop.f32.mrb[0].mxu0
    %194 = vmatprep.mubr.bf16.mxu0 0
    %195 = vmatmul.mubr.bf16.gmra.mrb[0].mxu0 %v76
    %v196 = vpop.f32.mrb[0].mxu0
    %v197 = vadd.f32 0.0, %v196
    %v198 = vpop.f32.mrb[0].mxu0
    %v199 = vpop.f32.mrb[0].mxu0
    %v200 = vadd.f32 0.0, %v199
    %v201 = vpop.f32.mrb[0].mxu0
    %202 = vmatprep.mubr.bf16.mxu0 0
    %203 = vmatmul.mubr.bf16.gmra.mrb[0].mxu0 %v77
    %v204 = vpop.f32.mrb[0].mxu0
    %v205 = vadd.f32 0.0, %v204
    %v206 = vpop.f32.mrb[0].mxu0
    %v207 = vpop.f32.mrb[0].mxu0
    %v208 = vadd.f32 0.0, %v207
    %v209 = vpop.f32.mrb[0].mxu0
    %210 = vmatprep.mubr.bf16.mxu0 0
    %211 = vmatmul.mubr.bf16.gmra.mrb[0].mxu0 %v78
    %v212 = vpop.f32.mrb[0].mxu0
    %v213 = vadd.f32 0.0, %v212
    %v214 = vpop.f32.mrb[0].mxu0
    %v215 = vpop.f32.mrb[0].mxu0
    %v216 = vadd.f32 0.0, %v215
    %v217 = vpop.f32.mrb[0].mxu0
    %218 = vmatprep.mubr.bf16.mxu0 0
    %219 = vmatmul.mubr.bf16.gmra.mrb[0].mxu0 %v79
    %v220 = vpop.f32.mrb[0].mxu0
    %v221 = vadd.f32 0.0, %v220
    %v222 = vpop.f32.mrb[0].mxu0
    %v223 = vpop.f32.mrb[0].mxu0
    %v224 = vadd.f32 0.0, %v223
    %v225 = vpop.f32.mrb[0].mxu0
    %226 = vmatprep.mubr.bf16.mxu0 0
    %227 = vmatmul.mubr.bf16.gmra.mrb[0].mxu0 %v80
    %v228 = vpop.f32.mrb[0].mxu0
    %v229 = vadd.f32 0.0, %v228
    %v230 = vpop.f32.mrb[0].mxu0
    %v231 = vpop.f32.mrb[0].mxu0
    %v232 = vadd.f32 0.0, %v231
    %v233 = vpop.f32.mrb[0].mxu0
    %234 = vmatprep.mubr.bf16.mxu0 0
    %235 = vmatmul.mubr.bf16.gmra.mrb[0].mxu0 %v81
    %v236 = vpop.f32.mrb[0].mxu0
    %v237 = vadd.f32 0.0, %v236
    %v238 = vpop.f32.mrb[0].mxu0
    %v239 = vpop.f32.mrb[0].mxu0
    %v240 = vadd.f32 0.0, %v239
    %v241 = vpop.f32.mrb[0].mxu0
    %242 = vdwg.mxu0
    %v243 = vadd.f32 %v42, %v181
    %v244 = vadd.f32 %v43, %v184
    %v245 = vadd.f32 %v44, %v189
    %v246 = vadd.f32 %v45, %v192
    %v247 = vadd.f32 %v46, %v197
    %v248 = vadd.f32 %v47, %v200
    %v249 = vadd.f32 %v48, %v205
    %v250 = vadd.f32 %v49, %v208
    %v251 = vadd.f32 %v50, %v213
    %v252 = vadd.f32 %v51, %v216
    %v253 = vadd.f32 %v52, %v221
    %v254 = vadd.f32 %v53, %v224
    %v255 = vadd.f32 %v54, %v229
    %v256 = vadd.f32 %v55, %v232
    %v257 = vadd.f32 %v56, %v237
    %v258 = vadd.f32 %v57, %v240
    %259 = vst [vmem:[#allocation3] sm:$0xff] %v243
    %260 = vst [vmem:[#allocation3 + $0x8] sm:$0xff] %v244
    %261 = vst [vmem:[#allocation3 + $0x10] sm:$0xff] %v245
    %262 = vst [vmem:[#allocation3 + $0x18] sm:$0xff] %v246
    %263 = vst [vmem:[#allocation3 + $0x20] sm:$0xff] %v247
    %264 = vst [vmem:[#allocation3 + $0x28] sm:$0xff] %v248
    %265 = vst [vmem:[#allocation3 + $0x30] sm:$0xff] %v249
    %266 = vst [vmem:[#allocation3 + $0x38] sm:$0xff] %v250
    %267 = vst [vmem:[#allocation3 + $0x40] sm:$0xff] %v251
    %268 = vst [vmem:[#allocation3 + $0x48] sm:$0xff] %v252
    %269 = vst [vmem:[#allocation3 + $0x50] sm:$0xff] %v253
    %270 = vst [vmem:[#allocation3 + $0x58] sm:$0xff] %v254
    %271 = vst [vmem:[#allocation3 + $0x60] sm:$0xff] %v255
    %272 = vst [vmem:[#allocation3 + $0x68] sm:$0xff] %v256
    %273 = vst [vmem:[#allocation3 + $0x70] sm:$0xff] %v257
    %274 = vst [vmem:[#allocation3 + $0x78] sm:$0xff] %v258
    // Predicated region
    $region22: #{gate_forward.1} parent=1 // pred_check
      %p275 = pneg %p17
    $region23: #{gate_forward.1} parent=1 // pred_check_branch
      %277 = sbr.rel (%p275) target = $region25
    $region24: #{gate_forward.1} parent=1 // pred_region
      %v278 = vld [vmem:[#allocation2] sm:$0xff]
      %v279 = vld [vmem:[%s0] sm:$0xff]
      %v280 = vpack.c.bf16 %v279, %v279
      %v281 = vld [vmem:[#allocation3] sm:$0xff]
      %v282 = vld [vmem:[#allocation3 + $0x8] sm:$0xff]
      %v283 = vld [vmem:[#allocation3 + $0x10] sm:$0xff]
      %v284 = vld [vmem:[#allocation3 + $0x18] sm:$0xff]
      %v285 = vld [vmem:[#allocation3 + $0x20] sm:$0xff]
      %v286 = vld [vmem:[#allocation3 + $0x28] sm:$0xff]
      %v287 = vld [vmem:[#allocation3 + $0x30] sm:$0xff]
      %v288 = vld [vmem:[#allocation3 + $0x38] sm:$0xff]
      %v289 = vld [vmem:[#allocation3 + $0x40] sm:$0xff]
      %v290 = vld [vmem:[#allocation3 + $0x48] sm:$0xff]
      %v291 = vld [vmem:[#allocation3 + $0x50] sm:$0xff]
      %v292 = vld [vmem:[#allocation3 + $0x58] sm:$0xff]
      %v293 = vld [vmem:[#allocation3 + $0x60] sm:$0xff]
      %v294 = vld [vmem:[#allocation3 + $0x68] sm:$0xff]
      %v295 = vld [vmem:[#allocation3 + $0x70] sm:$0xff]
      %v296 = vld [vmem:[#allocation3 + $0x78] sm:$0xff]
      %v297 = vpack.c.bf16 %v282, %v281
      %v298 = vpack.c.bf16 %v284, %v283
      %v299 = vpack.c.bf16 %v286, %v285
      %v300 = vpack.c.bf16 %v288, %v287
      %v301 = vpack.c.bf16 %v290, %v289
      %v302 = vpack.c.bf16 %v292, %v291
      %v303 = vpack.c.bf16 %v294, %v293
      %v304 = vpack.c.bf16 %v296, %v295
      %305 = vmatprep.subr.bf16.mxu0 0
      %306 = vmatpush1.bf16.msra.mxu0 %v297
      %307 = vmatprep.subr.bf16.mxu0 0
      %308 = vmatpush1.bf16.msra.mxu0 %v298
      %309 = vmatprep.subr.bf16.mxu0 0
      %310 = vmatpush1.bf16.msra.mxu0 %v299
      %311 = vmatprep.subr.bf16.mxu0 0
      %312 = vmatpush1.bf16.msra.mxu0 %v300
      %313 = vmatprep.subr.bf16.mxu0 0
      %314 = vmatpush1.bf16.msra.mxu0 %v301
      %315 = vmatprep.subr.bf16.mxu0 0
      %316 = vmatpush1.bf16.msra.mxu0 %v302
      %317 = vmatprep.subr.bf16.mxu0 0
      %318 = vmatpush1.bf16.msra.mxu0 %v303
      %319 = vmatprep.subr.bf16.mxu0 0
      %320 = vmatpush1.bf16.msra.mxu0 %v304
      %321 = vmatprep.subr.bf16.mxu0 0
      %322 = vmatpush1.bf16.msra.mxu0 0
      %323 = vmatprep.subr.bf16.mxu0 0
      %324 = vmatpush1.bf16.msra.mxu0 0
      %325 = vmatprep.subr.bf16.mxu0 0
      %326 = vmatpush1.bf16.msra.mxu0 0
      %327 = vmatprep.subr.bf16.mxu0 0
      %328 = vmatpush1.bf16.msra.mxu0 0
      %329 = vmatprep.subr.bf16.mxu0 0
      %330 = vmatpush1.bf16.msra.mxu0 0
      %331 = vmatprep.subr.bf16.mxu0 0
      %332 = vmatpush1.bf16.msra.mxu0 0
      %333 = vmatprep.subr.bf16.mxu0 0
      %334 = vmatpush1.bf16.msra.mxu0 0
      %335 = vmatprep.subr.bf16.mxu0 0
      %336 = vmatpush1.bf16.msra.mxu0 0
      %337 = vmatprep.mubr.bf16.mxu0 0
      %338 = vmatmul.mubr.bf16.gmra.mrb[0].mxu0 %v280
      %v339 = vpop.f32.mrb[0].mxu0
      %v340 = vadd.f32 0.0, %v339
      %v341 = vpop.f32.mrb[0].mxu0
      %v342 = vpop.f32.mrb[0].mxu0
      %v343 = vpop.f32.mrb[0].mxu0
      %344 = vdwg.mxu0
      %v345 = vadd.f32 %v278, %v340
      %346 = vst [vmem:[#allocation2] sm:$0xff] %v345
    $region25: #{gate_forward.1} parent=1 // pred_fallthru
      _
    // Predicated region
    $region26: #{gate_forward.1} parent=1 // pred_check
      _
    $region27: #{gate_forward.1} parent=1 // pred_check_branch
      %348 = sbr.rel (%p18) target = $region29
    $region28: #{gate_forward.1} parent=1 // pred_region
      %v349 = vld [vmem:[#allocation2] sm:$0xff]
      %v350 = vmax.f32 %v349, 0.0
      %351 = vst [vmem:[#allocation4] sm:$0xff] %v350
    $region29: #{gate_forward.1} parent=1 // pred_fallthru
      _
    // Predicated region
    $region30: #{gate_forward.1} parent=1 // pred_check
      _
    $region31: #{gate_forward.1} parent=1 // pred_check_branch
      %353 = sbr.rel (0) target = $region33
    $region32: #{gate_forward.1} parent=1 // pred_region
      %s355 = ssub.s32 128, 128
      %356 = vsyncadd [#allocation5], %s355
      %s358 = sshll.u32 [#allocation4], 4
      %s359 = int_to_ptr.vmem [resolvable:$true] %s358
      %361 = dma.vmem_to_hbm [thread:$0]  %s359, 128, %s3, [#allocation5]
    $region33: #{gate_forward.1} parent=1 // pred_fallthru
      _
    // Predicated region
    $region34: #{gate_forward.1} parent=1 // pred_check
      _
    $region35: #{gate_forward.1} parent=1 // pred_check_branch
      %363 = sbr.rel (0) target = $region37
    $region36: #{gate_forward.1} parent=1 // pred_region
      %364 = dma.done [#allocation5], 128
    $region37: #{gate_forward.1} parent=1 // pred_fallthru
      _
    %365 = vsyncpa [#allocation5], 1

</llo_original>
